<compile_context>
chip_gen: v5e
topology: v5e:2x2
jax: 0.10.0
libtpu: 0.0.40
codegen_flags: <defaults>
</compile_context>

<pallas_src>
import functools

import jax
import jax.numpy as jnp
from jax import lax
from jax.experimental import pallas as pl
from jax.experimental.pallas import tpu as pltpu

INPLANES = 4
PLANES = 8
N = 8          # batch folded into lanes: N*L = 128 -> fully lane-dense vregs
L = 16
EPS = 1e-5


def basic_block_kernel(x_ref,
                       w1_ref, g1_ref, b1_ref,
                       w2_ref, g2_ref, b2_ref,
                       w3_ref, g3_ref, b3_ref,
                       wds_ref, gds_ref, bds_ref,
                       o_ref,
                       *, seq_len):
    x = x_ref[...]                                        # (Ci, N*L) f32
    nl = x.shape[1]

    # --- hoisted, computed once per call -------------------------------------
    # Batch is folded into the lane dim, so the +/-1 taps must not leak across
    # sample boundaries: zero the "l-1" tap at l==0 and the "l+1" tap at l==L-1.
    lane = lax.broadcasted_iota(jnp.int32, (1, nl), 1)
    pos = lane % seq_len
    left_ok = (pos != 0).astype(jnp.float32)              # x[l-1] exists
    right_ok = (pos != seq_len - 1).astype(jnp.float32)   # x[l+1] exists

    def conv3(h, w2d):
        # h: (C, NL); w2d: (Co, 3C) with tap order [l-1, l, l+1] along columns.
        h_m1 = pltpu.roll(h, 1, 1) * left_ok              # h[l-1], zeroed at l==0
        h_p1 = pltpu.roll(h, nl - 1, 1) * right_ok        # h[l+1], zeroed at l==L-1
        hcat = jnp.concatenate([h_m1, h, h_p1], axis=0)   # (3C, NL)  im2col
        return jnp.dot(w2d, hcat, preferred_element_type=jnp.float32)

    def bn(y, gamma, beta, relu):
        # Training-mode BatchNorm1d: biased stats over (N,L) == lane axis,
        # folded into one scale/bias; ReLU fused into the same expression.
        mean = jnp.mean(y, axis=1, keepdims=True)
        var = jnp.mean((y - mean) ** 2, axis=1, keepdims=True)
        scale = gamma * lax.rsqrt(var + EPS)              # rsqrt -> EUP slot
        bias = beta - mean * scale
        out = y * scale + bias
        return jnp.maximum(out, 0.0) if relu else out

    out = bn(conv3(x, w1_ref[...]), g1_ref[...], b1_ref[...], relu=True)
    out = bn(conv3(out, w2_ref[...]), g2_ref[...], b2_ref[...], relu=True)
    out = bn(conv3(out, w3_ref[...]), g3_ref[...], b3_ref[...], relu=False)

    # Downsample path: 1x1 conv == plain (Co,Ci) x (Ci,NL) matmul.
    identity = jnp.dot(wds_ref[...], x, preferred_element_type=jnp.float32)
    identity = bn(identity, gds_ref[...], bds_ref[...], relu=False)

    o_ref[...] = jnp.maximum(out + identity, 0.0).astype(o_ref.dtype)


def basic_block(x, params):
    n, ci, length = x.shape
    nl = n * length

    # Lane-dense layout: fold batch into the lane (length) dim -> (C, N*L).
    x2d = jnp.transpose(x, (1, 0, 2)).reshape(ci, nl)

    def cat_taps(w):   # (Co, Ci, 3) -> (Co, 3*Ci); tap order [l-1, l, l+1]
        return jnp.concatenate([w[:, :, 0], w[:, :, 1], w[:, :, 2]], axis=1)

    def col(v):        # (C,) -> (C, 1) per-channel broadcast over lanes
        return v.reshape(-1, 1)

    args = (x2d,
            cat_taps(params["w1"]), col(params["g1"]), col(params["b1"]),
            cat_taps(params["w2"]), col(params["g2"]), col(params["b2"]),
            cat_taps(params["w3"]), col(params["g3"]), col(params["b3"]),
            params["wds"][:, :, 0], col(params["gds"]), col(params["bds"]))

    vmem = pl.BlockSpec(memory_space=pltpu.MemorySpace.VMEM)
    out2d = pl.pallas_call(
        functools.partial(basic_block_kernel, seq_len=length),
        out_shape=jax.ShapeDtypeStruct((PLANES, nl), jnp.float32),
        in_specs=[vmem] * len(args),
        out_specs=vmem,
    )(*args)

    # (Co, N*L) -> (N, Co, L)
    return jnp.transpose(out2d.reshape(PLANES, n, length), (1, 0, 2))


def reference(x, p):
    """Pure-JAX reference in NCL using lax.conv_general_dilated (NCL ≡ NCW)."""
    def conv(h, w, pad):
        return lax.conv_general_dilated(
            h, w, window_strides=(1,), padding=[(pad, pad)],
            dimension_numbers=("NCH", "OIH", "NCH"))

    def bn(y, g, b):
        m = jnp.mean(y, axis=(0, 2), keepdims=True)
        v = jnp.mean((y - m) ** 2, axis=(0, 2), keepdims=True)
        return ((y - m) / jnp.sqrt(v + EPS) * g.reshape(1, -1, 1)
                + b.reshape(1, -1, 1))

    out = jax.nn.relu(bn(conv(x, p["w1"], 1), p["g1"], p["b1"]))
    out = jax.nn.relu(bn(conv(out, p["w2"], 1), p["g2"], p["b2"]))
    out = bn(conv(out, p["w3"], 1), p["g3"], p["b3"])
    identity = bn(conv(x, p["wds"], 0), p["gds"], p["bds"])
    return jax.nn.relu(out + identity)


def init_params(key):
    ks = jax.random.split(key, 4)
    f32 = jnp.float32

    def w(k, shape):
        return (0.1 * jax.random.normal(k, shape)).astype(f32)

    ones = jnp.ones((PLANES,), f32)
    zeros = jnp.zeros((PLANES,), f32)
    return {
        "w1": w(ks[0], (PLANES, INPLANES, 3)), "g1": ones, "b1": zeros,
        "w2": w(ks[1], (PLANES, PLANES, 3)),   "g2": ones, "b2": zeros,
        "w3": w(ks[2], (PLANES, PLANES, 3)),   "g3": ones, "b3": zeros,
        "wds": w(ks[3], (PLANES, INPLANES, 1)), "gds": ones, "bds": zeros,
    }


if __name__ == "__main__":
    key = jax.random.PRNGKey(0)
    kx, kp = jax.random.split(key)
    x = jax.random.normal(kx, (N, INPLANES, L), dtype=jnp.float32)
    params = init_params(kp)

    out = jax.block_until_ready(basic_block(x, params))

    ref = reference(x, params)
    assert out.shape == (N, PLANES, L)
    assert jnp.allclose(out, ref, rtol=1e-3, atol=1e-3), (
        float(jnp.max(jnp.abs(out - ref))))
    print("KERNEL_OK")
</pallas_src>

<mosaic_0001>
module attributes {stable_mosaic.version = 11 : i64} {
  func.func @basic_block_kernel(%arg0: memref<4x128xf32, #tpu.memory_space<vmem>>, %arg1: memref<8x12xf32, #tpu.memory_space<vmem>>, %arg2: memref<8x1xf32, #tpu.memory_space<vmem>>, %arg3: memref<8x1xf32, #tpu.memory_space<vmem>>, %arg4: memref<8x24xf32, #tpu.memory_space<vmem>>, %arg5: memref<8x1xf32, #tpu.memory_space<vmem>>, %arg6: memref<8x1xf32, #tpu.memory_space<vmem>>, %arg7: memref<8x24xf32, #tpu.memory_space<vmem>>, %arg8: memref<8x1xf32, #tpu.memory_space<vmem>>, %arg9: memref<8x1xf32, #tpu.memory_space<vmem>>, %arg10: memref<8x4xf32, #tpu.memory_space<vmem>>, %arg11: memref<8x1xf32, #tpu.memory_space<vmem>>, %arg12: memref<8x1xf32, #tpu.memory_space<vmem>>, %arg13: memref<8x128xf32, #tpu.memory_space<vmem>>) attributes {dimension_semantics = [], scalar_prefetch = 0 : i64, scratch_operands = 0 : i64, tpu.core_type = #tpu.core_type<tc>} {
    %c0 = arith.constant 0 : index
    %c0_0 = arith.constant 0 : index
    %0 = vector.load %arg0[%c0, %c0_0] : memref<4x128xf32, #tpu.memory_space<vmem>>, vector<4x128xf32>
    %1 = tpu.iota {dimensions = array<i32: 1>} : vector<1x128xi32>
    %c16_i32 = arith.constant 16 : i32
    %c0_i32 = arith.constant 0 : i32
    %2 = arith.cmpi eq, %c16_i32, %c0_i32 : i32
    %c1_i32 = arith.constant 1 : i32
    %3 = arith.select %2, %c1_i32, %c16_i32 : i32
    %4 = vector.broadcast %3 : i32 to vector<1x128xi32>
    %5 = arith.remsi %1, %4 : vector<1x128xi32>
    %c0_i32_1 = arith.constant 0 : i32
    %6 = vector.broadcast %c0_i32_1 : i32 to vector<1x128xi32>
    %7 = arith.cmpi ne, %5, %6 : vector<1x128xi32>
    %c0_i32_2 = arith.constant 0 : i32
    %8 = vector.broadcast %c0_i32_2 : i32 to vector<1x128xi32>
    %9 = arith.cmpi slt, %5, %8 : vector<1x128xi32>
    %c0_i32_3 = arith.constant 0 : i32
    %10 = arith.cmpi slt, %3, %c0_i32_3 : i32
    %11 = vector.broadcast %10 : i1 to vector<1x128xi1>
    %12 = vector.broadcast %11 : vector<1x128xi1> to vector<1x128xi1>
    %13 = arith.xori %9, %12 : vector<1x128xi1>
    %14 = arith.andi %13, %7 : vector<1x128xi1>
    %15 = vector.broadcast %3 : i32 to vector<1x128xi32>
    %16 = arith.addi %5, %15 : vector<1x128xi32>
    %17 = arith.select %14, %16, %5 : vector<1x128xi1>, vector<1x128xi32>
    %c0_i32_4 = arith.constant 0 : i32
    %18 = vector.broadcast %c0_i32_4 : i32 to vector<1x128xi32>
    %19 = arith.cmpi ne, %17, %18 : vector<1x128xi32>
    %20 = arith.extui %19 : vector<1x128xi1> to vector<1x128xi32>
    %21 = arith.sitofp %20 : vector<1x128xi32> to vector<1x128xf32>
    %c15_i32 = arith.constant 15 : i32
    %22 = vector.broadcast %c15_i32 : i32 to vector<1x128xi32>
    %23 = arith.cmpi ne, %17, %22 : vector<1x128xi32>
    %24 = arith.extui %23 : vector<1x128xi1> to vector<1x128xi32>
    %25 = arith.sitofp %24 : vector<1x128xi32> to vector<1x128xf32>
    %c0_5 = arith.constant 0 : index
    %c0_6 = arith.constant 0 : index
    %26 = vector.load %arg1[%c0_5, %c0_6] : memref<8x12xf32, #tpu.memory_space<vmem>>, vector<8x12xf32>
    %c1_i32_7 = arith.constant 1 : i32
    %27 = tpu.dynamic_rotate %0 by %c1_i32_7 dim 1 : vector<4x128xf32>, i32 -> vector<4x128xf32>
    %28 = vector.broadcast %21 : vector<1x128xf32> to vector<4x128xf32>
    %29 = arith.mulf %27, %28 : vector<4x128xf32>
    %c127_i32 = arith.constant 127 : i32
    %30 = tpu.dynamic_rotate %0 by %c127_i32 dim 1 : vector<4x128xf32>, i32 -> vector<4x128xf32>
    %31 = vector.broadcast %25 : vector<1x128xf32> to vector<4x128xf32>
    %32 = arith.mulf %30, %31 : vector<4x128xf32>
    %33 = tpu.concatenate %29, %0, %32 in 0 : vector<4x128xf32>, vector<4x128xf32>, vector<4x128xf32> -> vector<12x128xf32>
    %cst = arith.constant dense<0.000000e+00> : vector<8x128xf32>
    %34 = tpu.matmul %26, %33, %cst {dimension_numbers = #tpu.dot_dimension_numbers<[1], [0], [0], [1], [0, 0, 1, 1], [], []>} : vector<8x12xf32>, vector<12x128xf32>, vector<8x128xf32> -> vector<8x128xf32>
    %c0_8 = arith.constant 0 : index
    %c0_9 = arith.constant 0 : index
    %35 = vector.load %arg2[%c0_8, %c0_9] : memref<8x1xf32, #tpu.memory_space<vmem>>, vector<8x1xf32>
    %c0_10 = arith.constant 0 : index
    %c0_11 = arith.constant 0 : index
    %36 = vector.load %arg3[%c0_10, %c0_11] : memref<8x1xf32, #tpu.memory_space<vmem>>, vector<8x1xf32>
    %cst_12 = arith.constant dense<0.000000e+00> : vector<8xf32>
    %37 = vector.multi_reduction <add>, %34, %cst_12 [1] : vector<8x128xf32> to vector<8xf32>
    %38 = vector.shape_cast %37 : vector<8xf32> to vector<8x1xf32>
    %cst_13 = arith.constant 1.280000e+02 : f32
    %39 = vector.broadcast %cst_13 : f32 to vector<8x1xf32>
    %40 = arith.divf %38, %39 : vector<8x1xf32>
    %41 = vector.broadcast %40 : vector<8x1xf32> to vector<8x128xf32>
    %42 = arith.subf %34, %41 : vector<8x128xf32>
    %43 = arith.mulf %42, %42 : vector<8x128xf32>
    %cst_14 = arith.constant dense<0.000000e+00> : vector<8xf32>
    %44 = vector.multi_reduction <add>, %43, %cst_14 [1] : vector<8x128xf32> to vector<8xf32>
    %45 = vector.shape_cast %44 : vector<8xf32> to vector<8x1xf32>
    %cst_15 = arith.constant 1.280000e+02 : f32
    %46 = vector.broadcast %cst_15 : f32 to vector<8x1xf32>
    %47 = arith.divf %45, %46 : vector<8x1xf32>
    %cst_16 = arith.constant 9.99999974E-6 : f32
    %48 = vector.broadcast %cst_16 : f32 to vector<8x1xf32>
    %49 = arith.addf %47, %48 : vector<8x1xf32>
    %50 = math.rsqrt %49 : vector<8x1xf32>
    %51 = arith.mulf %35, %50 : vector<8x1xf32>
    %52 = arith.mulf %40, %51 : vector<8x1xf32>
    %53 = arith.subf %36, %52 : vector<8x1xf32>
    %54 = vector.broadcast %51 : vector<8x1xf32> to vector<8x128xf32>
    %55 = arith.mulf %34, %54 : vector<8x128xf32>
    %56 = vector.broadcast %53 : vector<8x1xf32> to vector<8x128xf32>
    %57 = arith.addf %55, %56 : vector<8x128xf32>
    %cst_17 = arith.constant 0.000000e+00 : f32
    %58 = vector.broadcast %cst_17 : f32 to vector<8x128xf32>
    %59 = arith.maximumf %57, %58 : vector<8x128xf32>
    %c0_18 = arith.constant 0 : index
    %c0_19 = arith.constant 0 : index
    %60 = vector.load %arg4[%c0_18, %c0_19] : memref<8x24xf32, #tpu.memory_space<vmem>>, vector<8x24xf32>
    %c1_i32_20 = arith.constant 1 : i32
    %61 = tpu.dynamic_rotate %59 by %c1_i32_20 dim 1 : vector<8x128xf32>, i32 -> vector<8x128xf32>
    %62 = vector.broadcast %21 : vector<1x128xf32> to vector<8x128xf32>
    %63 = arith.mulf %61, %62 : vector<8x128xf32>
    %c127_i32_21 = arith.constant 127 : i32
    %64 = tpu.dynamic_rotate %59 by %c127_i32_21 dim 1 : vector<8x128xf32>, i32 -> vector<8x128xf32>
    %65 = vector.broadcast %25 : vector<1x128xf32> to vector<8x128xf32>
    %66 = arith.mulf %64, %65 : vector<8x128xf32>
    %67 = tpu.concatenate %63, %59, %66 in 0 : vector<8x128xf32>, vector<8x128xf32>, vector<8x128xf32> -> vector<24x128xf32>
    %cst_22 = arith.constant dense<0.000000e+00> : vector<8x128xf32>
    %68 = tpu.matmul %60, %67, %cst_22 {dimension_numbers = #tpu.dot_dimension_numbers<[1], [0], [0], [1], [0, 0, 1, 1], [], []>} : vector<8x24xf32>, vector<24x128xf32>, vector<8x128xf32> -> vector<8x128xf32>
    %c0_23 = arith.constant 0 : index
    %c0_24 = arith.constant 0 : index
    %69 = vector.load %arg5[%c0_23, %c0_24] : memref<8x1xf32, #tpu.memory_space<vmem>>, vector<8x1xf32>
    %c0_25 = arith.constant 0 : index
    %c0_26 = arith.constant 0 : index
    %70 = vector.load %arg6[%c0_25, %c0_26] : memref<8x1xf32, #tpu.memory_space<vmem>>, vector<8x1xf32>
    %cst_27 = arith.constant dense<0.000000e+00> : vector<8xf32>
    %71 = vector.multi_reduction <add>, %68, %cst_27 [1] : vector<8x128xf32> to vector<8xf32>
    %72 = vector.shape_cast %71 : vector<8xf32> to vector<8x1xf32>
    %cst_28 = arith.constant 1.280000e+02 : f32
    %73 = vector.broadcast %cst_28 : f32 to vector<8x1xf32>
    %74 = arith.divf %72, %73 : vector<8x1xf32>
    %75 = vector.broadcast %74 : vector<8x1xf32> to vector<8x128xf32>
    %76 = arith.subf %68, %75 : vector<8x128xf32>
    %77 = arith.mulf %76, %76 : vector<8x128xf32>
    %cst_29 = arith.constant dense<0.000000e+00> : vector<8xf32>
    %78 = vector.multi_reduction <add>, %77, %cst_29 [1] : vector<8x128xf32> to vector<8xf32>
    %79 = vector.shape_cast %78 : vector<8xf32> to vector<8x1xf32>
    %cst_30 = arith.constant 1.280000e+02 : f32
    %80 = vector.broadcast %cst_30 : f32 to vector<8x1xf32>
    %81 = arith.divf %79, %80 : vector<8x1xf32>
    %cst_31 = arith.constant 9.99999974E-6 : f32
    %82 = vector.broadcast %cst_31 : f32 to vector<8x1xf32>
    %83 = arith.addf %81, %82 : vector<8x1xf32>
    %84 = math.rsqrt %83 : vector<8x1xf32>
    %85 = arith.mulf %69, %84 : vector<8x1xf32>
    %86 = arith.mulf %74, %85 : vector<8x1xf32>
    %87 = arith.subf %70, %86 : vector<8x1xf32>
    %88 = vector.broadcast %85 : vector<8x1xf32> to vector<8x128xf32>
    %89 = arith.mulf %68, %88 : vector<8x128xf32>
    %90 = vector.broadcast %87 : vector<8x1xf32> to vector<8x128xf32>
    %91 = arith.addf %89, %90 : vector<8x128xf32>
    %cst_32 = arith.constant 0.000000e+00 : f32
    %92 = vector.broadcast %cst_32 : f32 to vector<8x128xf32>
    %93 = arith.maximumf %91, %92 : vector<8x128xf32>
    %c0_33 = arith.constant 0 : index
    %c0_34 = arith.constant 0 : index
    %94 = vector.load %arg7[%c0_33, %c0_34] : memref<8x24xf32, #tpu.memory_space<vmem>>, vector<8x24xf32>
    %c1_i32_35 = arith.constant 1 : i32
    %95 = tpu.dynamic_rotate %93 by %c1_i32_35 dim 1 : vector<8x128xf32>, i32 -> vector<8x128xf32>
    %96 = vector.broadcast %21 : vector<1x128xf32> to vector<8x128xf32>
    %97 = arith.mulf %95, %96 : vector<8x128xf32>
    %c127_i32_36 = arith.constant 127 : i32
    %98 = tpu.dynamic_rotate %93 by %c127_i32_36 dim 1 : vector<8x128xf32>, i32 -> vector<8x128xf32>
    %99 = vector.broadcast %25 : vector<1x128xf32> to vector<8x128xf32>
    %100 = arith.mulf %98, %99 : vector<8x128xf32>
    %101 = tpu.concatenate %97, %93, %100 in 0 : vector<8x128xf32>, vector<8x128xf32>, vector<8x128xf32> -> vector<24x128xf32>
    %cst_37 = arith.constant dense<0.000000e+00> : vector<8x128xf32>
    %102 = tpu.matmul %94, %101, %cst_37 {dimension_numbers = #tpu.dot_dimension_numbers<[1], [0], [0], [1], [0, 0, 1, 1], [], []>} : vector<8x24xf32>, vector<24x128xf32>, vector<8x128xf32> -> vector<8x128xf32>
    %c0_38 = arith.constant 0 : index
    %c0_39 = arith.constant 0 : index
    %103 = vector.load %arg8[%c0_38, %c0_39] : memref<8x1xf32, #tpu.memory_space<vmem>>, vector<8x1xf32>
    %c0_40 = arith.constant 0 : index
    %c0_41 = arith.constant 0 : index
    %104 = vector.load %arg9[%c0_40, %c0_41] : memref<8x1xf32, #tpu.memory_space<vmem>>, vector<8x1xf32>
    %cst_42 = arith.constant dense<0.000000e+00> : vector<8xf32>
    %105 = vector.multi_reduction <add>, %102, %cst_42 [1] : vector<8x128xf32> to vector<8xf32>
    %106 = vector.shape_cast %105 : vector<8xf32> to vector<8x1xf32>
    %cst_43 = arith.constant 1.280000e+02 : f32
    %107 = vector.broadcast %cst_43 : f32 to vector<8x1xf32>
    %108 = arith.divf %106, %107 : vector<8x1xf32>
    %109 = vector.broadcast %108 : vector<8x1xf32> to vector<8x128xf32>
    %110 = arith.subf %102, %109 : vector<8x128xf32>
    %111 = arith.mulf %110, %110 : vector<8x128xf32>
    %cst_44 = arith.constant dense<0.000000e+00> : vector<8xf32>
    %112 = vector.multi_reduction <add>, %111, %cst_44 [1] : vector<8x128xf32> to vector<8xf32>
    %113 = vector.shape_cast %112 : vector<8xf32> to vector<8x1xf32>
    %cst_45 = arith.constant 1.280000e+02 : f32
    %114 = vector.broadcast %cst_45 : f32 to vector<8x1xf32>
    %115 = arith.divf %113, %114 : vector<8x1xf32>
    %cst_46 = arith.constant 9.99999974E-6 : f32
    %116 = vector.broadcast %cst_46 : f32 to vector<8x1xf32>
    %117 = arith.addf %115, %116 : vector<8x1xf32>
    %118 = math.rsqrt %117 : vector<8x1xf32>
    %119 = arith.mulf %103, %118 : vector<8x1xf32>
    %120 = arith.mulf %108, %119 : vector<8x1xf32>
    %121 = arith.subf %104, %120 : vector<8x1xf32>
    %122 = vector.broadcast %119 : vector<8x1xf32> to vector<8x128xf32>
    %123 = arith.mulf %102, %122 : vector<8x128xf32>
    %124 = vector.broadcast %121 : vector<8x1xf32> to vector<8x128xf32>
    %125 = arith.addf %123, %124 : vector<8x128xf32>
    %c0_47 = arith.constant 0 : index
    %c0_48 = arith.constant 0 : index
    %126 = vector.load %arg10[%c0_47, %c0_48] : memref<8x4xf32, #tpu.memory_space<vmem>>, vector<8x4xf32>
    %cst_49 = arith.constant dense<0.000000e+00> : vector<8x128xf32>
    %127 = tpu.matmul %126, %0, %cst_49 {dimension_numbers = #tpu.dot_dimension_numbers<[1], [0], [0], [1], [0, 0, 1, 1], [], []>} : vector<8x4xf32>, vector<4x128xf32>, vector<8x128xf32> -> vector<8x128xf32>
    %c0_50 = arith.constant 0 : index
    %c0_51 = arith.constant 0 : index
    %128 = vector.load %arg11[%c0_50, %c0_51] : memref<8x1xf32, #tpu.memory_space<vmem>>, vector<8x1xf32>
    %c0_52 = arith.constant 0 : index
    %c0_53 = arith.constant 0 : index
    %129 = vector.load %arg12[%c0_52, %c0_53] : memref<8x1xf32, #tpu.memory_space<vmem>>, vector<8x1xf32>
    %cst_54 = arith.constant dense<0.000000e+00> : vector<8xf32>
    %130 = vector.multi_reduction <add>, %127, %cst_54 [1] : vector<8x128xf32> to vector<8xf32>
    %131 = vector.shape_cast %130 : vector<8xf32> to vector<8x1xf32>
    %cst_55 = arith.constant 1.280000e+02 : f32
    %132 = vector.broadcast %cst_55 : f32 to vector<8x1xf32>
    %133 = arith.divf %131, %132 : vector<8x1xf32>
    %134 = vector.broadcast %133 : vector<8x1xf32> to vector<8x128xf32>
    %135 = arith.subf %127, %134 : vector<8x128xf32>
    %136 = arith.mulf %135, %135 : vector<8x128xf32>
    %cst_56 = arith.constant dense<0.000000e+00> : vector<8xf32>
    %137 = vector.multi_reduction <add>, %136, %cst_56 [1] : vector<8x128xf32> to vector<8xf32>
    %138 = vector.shape_cast %137 : vector<8xf32> to vector<8x1xf32>
    %cst_57 = arith.constant 1.280000e+02 : f32
    %139 = vector.broadcast %cst_57 : f32 to vector<8x1xf32>
    %140 = arith.divf %138, %139 : vector<8x1xf32>
    %cst_58 = arith.constant 9.99999974E-6 : f32
    %141 = vector.broadcast %cst_58 : f32 to vector<8x1xf32>
    %142 = arith.addf %140, %141 : vector<8x1xf32>
    %143 = math.rsqrt %142 : vector<8x1xf32>
    %144 = arith.mulf %128, %143 : vector<8x1xf32>
    %145 = arith.mulf %133, %144 : vector<8x1xf32>
    %146 = arith.subf %129, %145 : vector<8x1xf32>
    %147 = vector.broadcast %144 : vector<8x1xf32> to vector<8x128xf32>
    %148 = arith.mulf %127, %147 : vector<8x128xf32>
    %149 = vector.broadcast %146 : vector<8x1xf32> to vector<8x128xf32>
    %150 = arith.addf %148, %149 : vector<8x128xf32>
    %151 = arith.addf %125, %150 : vector<8x128xf32>
    %cst_59 = arith.constant 0.000000e+00 : f32
    %152 = vector.broadcast %cst_59 : f32 to vector<8x128xf32>
    %153 = arith.maximumf %151, %152 : vector<8x128xf32>
    %c0_60 = arith.constant 0 : index
    %c0_61 = arith.constant 0 : index
    %154 = vector.load %arg13[%c0_60, %c0_61] : memref<8x128xf32, #tpu.memory_space<vmem>>, vector<8x128xf32>
    tpu.vector_store %arg13[%c0_60, %c0_61], %153 {strides = array<i32>} : memref<8x128xf32, #tpu.memory_space<vmem>>, vector<8x128xf32>,
    return
  }
}

</mosaic_0001>

<llo_original>
// kernel: tpu_custom_call.1
$region0: #{tpu_custom_call.1}
  #allocation0 [shape = 'u32[]', space=smem, size = 0x4, offset = 0x4, fixed_abs, tag = 'smem constant byte address 0x4 - core index']
  #allocation1 [shape = 'u32[72,128]{1,0:T(1,128)}', space=vmem, size = 0x9000, scoped, tag = 'internal scratch']
  %s0 = inlined_call_operand.vmem [shape: f32[4,128], index: 0, kind: input, shape index: {}]
  %s1 = inlined_call_operand.vmem [shape: f32[8,12], index: 1, kind: input, shape index: {}]
  %s2 = inlined_call_operand.vmem [shape: f32[8,1], index: 2, kind: input, shape index: {}]
  %s3 = inlined_call_operand.vmem [shape: f32[8,1], index: 3, kind: input, shape index: {}]
  %s4 = inlined_call_operand.vmem [shape: f32[8,24], index: 4, kind: input, shape index: {}]
  %s5 = inlined_call_operand.vmem [shape: f32[8,1], index: 5, kind: input, shape index: {}]
  %s6 = inlined_call_operand.vmem [shape: f32[8,1], index: 6, kind: input, shape index: {}]
  %s7 = inlined_call_operand.vmem [shape: f32[8,24], index: 7, kind: input, shape index: {}]
  %s8 = inlined_call_operand.vmem [shape: f32[8,1], index: 8, kind: input, shape index: {}]
  %s9 = inlined_call_operand.vmem [shape: f32[8,1], index: 9, kind: input, shape index: {}]
  %s10 = inlined_call_operand.vmem [shape: f32[8,4], index: 10, kind: input, shape index: {}]
  %s11 = inlined_call_operand.vmem [shape: f32[8,1], index: 11, kind: input, shape index: {}]
  %s12 = inlined_call_operand.vmem [shape: f32[8,1], index: 12, kind: input, shape index: {}]
  %s13 = inlined_call_operand.hbm [shape: f32[8,128], index: 13, kind: output, shape index: {}]
  %s14 = sld [smem:[#allocation0]]
  $region62: #{tpu_custom_call.1} parent=0
    _
  %s16 = ssub.s32 1, %s14
  %s17 = scalar_select 0, %s16, %s14
  $region1: #{tpu_custom_call.1} parent=0
    #allocation2 [shape = 'u8[4096]{0}', space=vmem, size = 0x1000, scoped, tag = 'output window, operand 0, single buffered']
    #allocation3 [shape = 's32[1]{0}', space=sflag, size = 0x4, scoped, tag = 'scoped memory for tpu_custom_call.1']
    %18 = vsyncpa [#allocation3], 0
    // Predicated region
    $region2: #{tpu_custom_call.1} parent=1 // pred_check
      _
    $region3: #{tpu_custom_call.1} parent=1 // pred_check_branch
      %20 = sbr.rel (0) target = $region5
    $region4: #{tpu_custom_call.1} parent=1 // pred_region
      _
    $region5: #{tpu_custom_call.1} parent=1 // pred_fallthru
      _
    // Predicated region
    $region6: #{tpu_custom_call.1} parent=1 // pred_check
      _
    $region7: #{tpu_custom_call.1} parent=1 // pred_check_branch
      %22 = sbr.rel (0) target = $region9
    $region8: #{tpu_custom_call.1} parent=1 // pred_region
      _
    $region9: #{tpu_custom_call.1} parent=1 // pred_fallthru
      _
    // Predicated region
    $region10: #{tpu_custom_call.1} parent=1 // pred_check
      _
    $region11: #{tpu_custom_call.1} parent=1 // pred_check_branch
      %24 = sbr.rel (0) target = $region13
    $region12: #{tpu_custom_call.1} parent=1 // pred_region
      _
    $region13: #{tpu_custom_call.1} parent=1 // pred_fallthru
      _
    // Predicated region
    $region14: #{tpu_custom_call.1} parent=1 // pred_check
      _
    $region15: #{tpu_custom_call.1} parent=1 // pred_check_branch
      %26 = sbr.rel (0) target = $region17
    $region16: #{tpu_custom_call.1} parent=1 // pred_region
      _
    $region17: #{tpu_custom_call.1} parent=1 // pred_fallthru
      _
    // Predicated region
    $region18: #{tpu_custom_call.1} parent=1 // pred_check
      _
    $region19: #{tpu_custom_call.1} parent=1 // pred_check_branch
      %28 = sbr.rel (0) target = $region21
    $region20: #{tpu_custom_call.1} parent=1 // pred_region
      _
    $region21: #{tpu_custom_call.1} parent=1 // pred_fallthru
      _
    // Predicated region
    $region22: #{tpu_custom_call.1} parent=1 // pred_check
      _
    $region23: #{tpu_custom_call.1} parent=1 // pred_check_branch
      %30 = sbr.rel (0) target = $region25
    $region24: #{tpu_custom_call.1} parent=1 // pred_region
      _
    $region25: #{tpu_custom_call.1} parent=1 // pred_fallthru
      _
    // Predicated region
    $region26: #{tpu_custom_call.1} parent=1 // pred_check
      _
    $region27: #{tpu_custom_call.1} parent=1 // pred_check_branch
      %32 = sbr.rel (0) target = $region29
    $region28: #{tpu_custom_call.1} parent=1 // pred_region
      _
    $region29: #{tpu_custom_call.1} parent=1 // pred_fallthru
      _
    // Predicated region
    $region30: #{tpu_custom_call.1} parent=1 // pred_check
      _
    $region31: #{tpu_custom_call.1} parent=1 // pred_check_branch
      %34 = sbr.rel (0) target = $region33
    $region32: #{tpu_custom_call.1} parent=1 // pred_region
      _
    $region33: #{tpu_custom_call.1} parent=1 // pred_fallthru
      _
    // Predicated region
    $region34: #{tpu_custom_call.1} parent=1 // pred_check
      _
    $region35: #{tpu_custom_call.1} parent=1 // pred_check_branch
      %36 = sbr.rel (0) target = $region37
    $region36: #{tpu_custom_call.1} parent=1 // pred_region
      _
    $region37: #{tpu_custom_call.1} parent=1 // pred_fallthru
      _
    // Predicated region
    $region38: #{tpu_custom_call.1} parent=1 // pred_check
      _
    $region39: #{tpu_custom_call.1} parent=1 // pred_check_branch
      %38 = sbr.rel (0) target = $region41
    $region40: #{tpu_custom_call.1} parent=1 // pred_region
      _
    $region41: #{tpu_custom_call.1} parent=1 // pred_fallthru
      _
    // Predicated region
    $region42: #{tpu_custom_call.1} parent=1 // pred_check
      _
    $region43: #{tpu_custom_call.1} parent=1 // pred_check_branch
      %40 = sbr.rel (0) target = $region45
    $region44: #{tpu_custom_call.1} parent=1 // pred_region
      _
    $region45: #{tpu_custom_call.1} parent=1 // pred_fallthru
      _
    // Predicated region
    $region46: #{tpu_custom_call.1} parent=1 // pred_check
      _
    $region47: #{tpu_custom_call.1} parent=1 // pred_check_branch
      %42 = sbr.rel (0) target = $region49
    $region48: #{tpu_custom_call.1} parent=1 // pred_region
      _
    $region49: #{tpu_custom_call.1} parent=1 // pred_fallthru
      _
    // Predicated region
    $region50: #{tpu_custom_call.1} parent=1 // pred_check
      _
    $region51: #{tpu_custom_call.1} parent=1 // pred_check_branch
      %44 = sbr.rel (0) target = $region53
    $region52: #{tpu_custom_call.1} parent=1 // pred_region
      _
    $region53: #{tpu_custom_call.1} parent=1 // pred_fallthru
      _
    %v45 = vld [vmem:[%s0] sm:$0xf]
    %v46 = vlaneseq
    %v47 = vand.u32 %v46, 127
    %vm48 = vcmp.lt.s32.totalorder %v47, 0
    %v49 = vsub.s32 0, %v47
    %v50 = vsel %vm48, %v49, %v47
    %v51 = vshrl.u32 %v50, 4
    %v52 = vand.u32 %v50, 15
    %v53 = vsub.s32 0, %v52
    %v54 = vsel %vm48, %v53, %v52
    %vm55 = vcmp.ne.s32.totalorder %v54, 0
    %vm56 = vcmp.lt.s32.totalorder %v54, 0
    %vm57 = vmand %vm56, %vm55
    %v58 = vadd.s32 %v54, 16
    %v59 = vsel %vm57, %v58, %v54
    %vm60 = vcmp.ne.s32.totalorder %v59, 0
    %v61 = vsel %vm60, 1, 0
    %v62 = vcvt.s32.f32 %v61
    %vm63 = vcmp.ne.s32.totalorder %v59, 15
    %v64 = vsel %vm63, 1, 0
    %v65 = vcvt.s32.f32 %v64
    %v66 = vld [vmem:[%s1] sm:$0xff]
    %67 = vrot.lane.b32.xlu0 %v45, 1
    %v68 = vpop.permute.xlu0 %67
    %v69 = vmul.f32 %v68, %v62
    %70 = vrot.lane.b32.xlu0 %v45, 127
    %v71 = vpop.permute.xlu0 %70
    %v72 = vmul.f32 %v71, %v65
    %v74 = vrot.slane %v45, 4
    %vm76 = vcmask 1043456
    %v77 = vsel %vm76, %v69, %v74
    %vm78 = vcmask 97280
    %v80 = vsel %vm78, %v66, 0
    %v83 = vsel %vm76, %v72, 0
    %85 = vmatpush.msra.mxu0 0.0
    %86 = vmatpush.msra.mxu0 0.0
    %87 = vmatpush.msra.mxu0 0.0
    %88 = vmatpush.msra.mxu0 0.0
    %89 = vmatpush.msra.mxu0 0.0
    %90 = vmatpush.msra.mxu0 0.0
    %91 = vmatpush.msra.mxu0 0.0
    %92 = vmatpush.msra.mxu0 0.0
    %93 = vmatpush.msra.mxu0 0.0
    %94 = vmatpush.msra.mxu0 0.0
    %95 = vmatpush.msra.mxu0 0.0
    %96 = vmatpush.msra.mxu0 0.0
    %97 = vmatpush.msra.mxu0 0.0
    %98 = vmatpush.msra.mxu0 0.0
    %99 = vmatpush.msra.mxu0 %v83
    %100 = vmatpush.msra.mxu0 %v77
    %101 = vmatmul.f32.gmra.mxu0 %v80
    %v102 = vpop.f32.mrf.mxu0
    %v103 = vadd.f32 0.0, %v102
    %104 = vdwg.mxu0
    %v105 = vld [vmem:[%s2] sm:$0xff]
    %v106 = vld [vmem:[%s3] sm:$0xff]
    %107 = vadd.xlane.f32.xlu0 %v103
    %v108 = vpop.xlane.xlu0 %107
    %v109 = vrcp.pop 128.0
    %v110 = vmul.f32 128.0, %v109
    %v111 = vsub.f32 1.0, %v110
    %v112 = vmul.f32 %v109, %v111
    %v113 = vadd.f32 %v109, %v112
    %vm114 = vweird.f32 %v109
    %v115 = vsel %vm114, %v109, %v113
    %v116 = vmul.f32 %v108, %v115
    %v117 = vsub.f32 %v103, %v116
    %v118 = vmul.f32 %v117, %v117
    %119 = vadd.xlane.f32.xlu0 %v118
    %v120 = vpop.xlane.xlu0 %119
    %v121 = vmul.f32 %v120, %v115
    %v122 = vadd.f32 %v121, 1e-05
    %v123 = vrsqrt.pop %v122
    %v124 = vmul.f32 %v123, %v122
    %v125 = vmul.f32 %v124, %v123
    %v126 = vmul.f32 0.5, %v125
    %v127 = vsub.f32 1.5, %v126
    %v128 = vmul.f32 %v123, %v127
    %vm129 = vweird.f32 %v122
    %vm130 = vweird.f32 %v123
    %vm131 = vmor %vm129, %vm130
    %v132 = vsel %vm131, %v123, %v128
    %v133 = vmul.f32 %v105, %v132
    %v134 = vmul.f32 %v116, %v133
    %v135 = vsub.f32 %v106, %v134
    %137 = vset.pattern.permute.xlu0 0
    %138 = vperm.xlu0 %137, %v133
    %v139 = vpop.permute.xlu0 %138
    %v141 = vmul.f32 %v103, %v139
    %143 = vset.pattern.permute.xlu0 0
    %144 = vperm.xlu0 %143, %v135
    %v145 = vpop.permute.xlu0 %144
    %v147 = vadd.f32 %v141, %v145
    %v148 = vmax.f32 %v147, 0.0
    %v149 = vld [vmem:[%s4] sm:$0xff]
    %150 = vrot.lane.b32.xlu0 %v148, 1
    %v151 = vpop.permute.xlu0 %150
    %v152 = vmul.f32 %v151, %v62
    %153 = vrot.lane.b32.xlu0 %v148, 127
    %v154 = vpop.permute.xlu0 %153
    %v155 = vmul.f32 %v154, %v65
    %vm156 = vcmask 195584
    %v158 = vsel %vm156, %v149, 0
    %160 = vmatpush.msra.mxu0 0.0
    %161 = vmatpush.msra.mxu0 0.0
    %162 = vmatpush.msra.mxu0 0.0
    %163 = vmatpush.msra.mxu0 0.0
    %164 = vmatpush.msra.mxu0 0.0
    %165 = vmatpush.msra.mxu0 0.0
    %166 = vmatpush.msra.mxu0 0.0
    %167 = vmatpush.msra.mxu0 0.0
    %168 = vmatpush.msra.mxu0 0.0
    %169 = vmatpush.msra.mxu0 0.0
    %170 = vmatpush.msra.mxu0 0.0
    %171 = vmatpush.msra.mxu0 0.0
    %172 = vmatpush.msra.mxu0 0.0
    %173 = vmatpush.msra.mxu0 %v155
    %174 = vmatpush.msra.mxu0 %v148
    %175 = vmatpush.msra.mxu0 %v152
    %176 = vmatmul.f32.gmra.mxu0 %v158
    %v177 = vpop.f32.mrf.mxu0
    %v178 = vadd.f32 0.0, %v177
    %179 = vdwg.mxu0
    %v180 = vld [vmem:[%s5] sm:$0xff]
    %v181 = vld [vmem:[%s6] sm:$0xff]
    %182 = vadd.xlane.f32.xlu0 %v178
    %v183 = vpop.xlane.xlu0 %182
    %v184 = vmul.f32 %v183, %v115
    %v185 = vsub.f32 %v178, %v184
    %v186 = vmul.f32 %v185, %v185
    %187 = vadd.xlane.f32.xlu0 %v186
    %v188 = vpop.xlane.xlu0 %187
    %v189 = vmul.f32 %v188, %v115
    %v190 = vadd.f32 %v189, 1e-05
    %v191 = vrsqrt.pop %v190
    %v192 = vmul.f32 %v191, %v190
    %v193 = vmul.f32 %v192, %v191
    %v194 = vmul.f32 0.5, %v193
    %v195 = vsub.f32 1.5, %v194
    %v196 = vmul.f32 %v191, %v195
    %vm197 = vweird.f32 %v190
    %vm198 = vweird.f32 %v191
    %vm199 = vmor %vm197, %vm198
    %v200 = vsel %vm199, %v191, %v196
    %v201 = vmul.f32 %v180, %v200
    %v202 = vmul.f32 %v184, %v201
    %v203 = vsub.f32 %v181, %v202
    %205 = vset.pattern.permute.xlu0 0
    %206 = vperm.xlu0 %205, %v201
    %v207 = vpop.permute.xlu0 %206
    %v209 = vmul.f32 %v178, %v207
    %211 = vset.pattern.permute.xlu0 0
    %212 = vperm.xlu0 %211, %v203
    %v213 = vpop.permute.xlu0 %212
    %v215 = vadd.f32 %v209, %v213
    %v216 = vmax.f32 %v215, 0.0
    %v217 = vld [vmem:[%s7] sm:$0xff]
    %218 = vrot.lane.b32.xlu0 %v216, 1
    %v219 = vpop.permute.xlu0 %218
    %v220 = vmul.f32 %v219, %v62
    %221 = vrot.lane.b32.xlu0 %v216, 127
    %v222 = vpop.permute.xlu0 %221
    %v223 = vmul.f32 %v222, %v65
    %v225 = vsel %vm156, %v217, 0
    %227 = vmatpush.msra.mxu0 0.0
    %228 = vmatpush.msra.mxu0 0.0
    %229 = vmatpush.msra.mxu0 0.0
    %230 = vmatpush.msra.mxu0 0.0
    %231 = vmatpush.msra.mxu0 0.0
    %232 = vmatpush.msra.mxu0 0.0
    %233 = vmatpush.msra.mxu0 0.0
    %234 = vmatpush.msra.mxu0 0.0
    %235 = vmatpush.msra.mxu0 0.0
    %236 = vmatpush.msra.mxu0 0.0
    %237 = vmatpush.msra.mxu0 0.0
    %238 = vmatpush.msra.mxu0 0.0
    %239 = vmatpush.msra.mxu0 0.0
    %240 = vmatpush.msra.mxu0 %v223
    %241 = vmatpush.msra.mxu0 %v216
    %242 = vmatpush.msra.mxu0 %v220
    %243 = vmatmul.f32.gmra.mxu0 %v225
    %v244 = vpop.f32.mrf.mxu0
    %v245 = vadd.f32 0.0, %v244
    %246 = vdwg.mxu0
    %v247 = vld [vmem:[%s8] sm:$0xff]
    %v248 = vld [vmem:[%s9] sm:$0xff]
    %249 = vadd.xlane.f32.xlu0 %v245
    %v250 = vpop.xlane.xlu0 %249
    %v251 = vmul.f32 %v250, %v115
    %v252 = vsub.f32 %v245, %v251
    %v253 = vmul.f32 %v252, %v252
    %254 = vadd.xlane.f32.xlu0 %v253
    %v255 = vpop.xlane.xlu0 %254
    %v256 = vmul.f32 %v255, %v115
    %v257 = vadd.f32 %v256, 1e-05
    %v258 = vrsqrt.pop %v257
    %v259 = vmul.f32 %v258, %v257
    %v260 = vmul.f32 %v259, %v258
    %v261 = vmul.f32 0.5, %v260
    %v262 = vsub.f32 1.5, %v261
    %v263 = vmul.f32 %v258, %v262
    %vm264 = vweird.f32 %v257
    %vm265 = vweird.f32 %v258
    %vm266 = vmor %vm264, %vm265
    %v267 = vsel %vm266, %v258, %v263
    %v268 = vmul.f32 %v247, %v267
    %v269 = vmul.f32 %v251, %v268
    %v270 = vsub.f32 %v248, %v269
    %272 = vset.pattern.permute.xlu0 0
    %273 = vperm.xlu0 %272, %v268
    %v274 = vpop.permute.xlu0 %273
    %v276 = vmul.f32 %v245, %v274
    %278 = vset.pattern.permute.xlu0 0
    %279 = vperm.xlu0 %278, %v270
    %v280 = vpop.permute.xlu0 %279
    %v282 = vadd.f32 %v276, %v280
    %v283 = vld [vmem:[%s10] sm:$0xff]
    %vm284 = vcmask 31744
    %v286 = vsel %vm284, %v283, 0
    %v288 = vsel %vm76, %v45, 0
    %290 = vmatpush.msra.mxu0 0.0
    %291 = vmatpush.msra.mxu0 0.0
    %292 = vmatpush.msra.mxu0 0.0
    %293 = vmatpush.msra.mxu0 0.0
    %294 = vmatpush.msra.mxu0 0.0
    %295 = vmatpush.msra.mxu0 0.0
    %296 = vmatpush.msra.mxu0 0.0
    %297 = vmatpush.msra.mxu0 0.0
    %298 = vmatpush.msra.mxu0 0.0
    %299 = vmatpush.msra.mxu0 0.0
    %300 = vmatpush.msra.mxu0 0.0
    %301 = vmatpush.msra.mxu0 0.0
    %302 = vmatpush.msra.mxu0 0.0
    %303 = vmatpush.msra.mxu0 0.0
    %304 = vmatpush.msra.mxu0 0.0
    %305 = vmatpush.msra.mxu0 %v288
    %306 = vmatmul.f32.gmra.mxu0 %v286
    %v307 = vpop.f32.mrf.mxu0
    %v308 = vadd.f32 0.0, %v307
    %309 = vdwg.mxu0
    %v310 = vld [vmem:[%s11] sm:$0xff]
    %v311 = vld [vmem:[%s12] sm:$0xff]
    %312 = vadd.xlane.f32.xlu0 %v308
    %v313 = vpop.xlane.xlu0 %312
    %v314 = vmul.f32 %v313, %v115
    %v315 = vsub.f32 %v308, %v314
    %v316 = vmul.f32 %v315, %v315
    %317 = vadd.xlane.f32.xlu0 %v316
    %v318 = vpop.xlane.xlu0 %317
    %v319 = vmul.f32 %v318, %v115
    %v320 = vadd.f32 %v319, 1e-05
    %v321 = vrsqrt.pop %v320
    %v322 = vmul.f32 %v321, %v320
    %v323 = vmul.f32 %v322, %v321
    %v324 = vmul.f32 0.5, %v323
    %v325 = vsub.f32 1.5, %v324
    %v326 = vmul.f32 %v321, %v325
    %vm327 = vweird.f32 %v320
    %vm328 = vweird.f32 %v321
    %vm329 = vmor %vm327, %vm328
    %v330 = vsel %vm329, %v321, %v326
    %v331 = vmul.f32 %v310, %v330
    %v332 = vmul.f32 %v314, %v331
    %v333 = vsub.f32 %v311, %v332
    %335 = vset.pattern.permute.xlu0 0
    %336 = vperm.xlu0 %335, %v331
    %v337 = vpop.permute.xlu0 %336
    %v339 = vmul.f32 %v308, %v337
    %341 = vset.pattern.permute.xlu0 0
    %342 = vperm.xlu0 %341, %v333
    %v343 = vpop.permute.xlu0 %342
    %v345 = vadd.f32 %v339, %v343
    %v346 = vadd.f32 %v282, %v345
    %v347 = vmax.f32 %v346, 0.0
    %348 = vst [vmem:[#allocation2] sm:$0xff] %v347
    // Predicated region
    $region54: #{tpu_custom_call.1} parent=1 // pred_check
      _
    $region55: #{tpu_custom_call.1} parent=1 // pred_check_branch
      %350 = sbr.rel (0) target = $region57
    $region56: #{tpu_custom_call.1} parent=1 // pred_region
      %352 = vsyncadd [#allocation3], 0
      %s354 = sshll.u32 [#allocation2], 4
      %s355 = int_to_ptr.vmem [resolvable:$true] %s354
      %s356 = sshll.u32 %s13, 4
      %s357 = int_to_ptr.hbm [resolvable:$true] %s356
      %359 = dma.vmem_to_hbm [thread:$0]  %s355, 128, %s357, [#allocation3]
    $region57: #{tpu_custom_call.1} parent=1 // pred_fallthru
      _
    // Predicated region
    $region58: #{tpu_custom_call.1} parent=1 // pred_check
      _
    $region59: #{tpu_custom_call.1} parent=1 // pred_check_branch
      %361 = sbr.rel (0) target = $region61
    $region60: #{tpu_custom_call.1} parent=1 // pred_region
      %363 = dma.done [#allocation3], 128
    $region61: #{tpu_custom_call.1} parent=1 // pred_fallthru
      _
    %364 = vsyncpa [#allocation3], 1

</llo_original>
